<compile_context>
chip_gen: v7x
topology: tpu7x:2x2x1
jax: 0.10.0
libtpu: 0.0.40
codegen_flags: <defaults>
</compile_context>

<pallas_src>
import jax
import jax.numpy as jnp
import numpy as np
from jax.experimental import pallas as pl
from jax.experimental.pallas import tpu as pltpu


# ----------------------------------------------------------------------------
# One-shot projection kernel: ne = emb @ memory, plus pre-transposed keys.
# Runs once (no grid); the row-tiled kernel reuses its outputs every step.
# ----------------------------------------------------------------------------
def _project_kernel(e0_ref, e1_ref, mem_ref,
                    ne0q_ref, ne1q_ref, ne0t_ref, ne1t_ref):
    mem = mem_ref[...]                                                    # (M, D)
    ne0 = jnp.dot(e0_ref[...], mem, preferred_element_type=jnp.float32)  # (N, D)
    ne1 = jnp.dot(e1_ref[...], mem, preferred_element_type=jnp.float32)  # (N, D)
    # bf16 operands for the MXU similarity matmuls (accumulation stays f32).
    ne0q_ref[...] = ne0.astype(jnp.bfloat16)
    ne1q_ref[...] = ne1.astype(jnp.bfloat16)
    # Pre-transposed keys: one transpose total instead of one per row tile.
    ne0t_ref[...] = ne0.T.astype(jnp.bfloat16)
    ne1t_ref[...] = ne1.T.astype(jnp.bfloat16)


# ----------------------------------------------------------------------------
# Row-tiled kernel: one (TN, N) row tile of BOTH output graphs per grid step.
# ----------------------------------------------------------------------------
def _megagraph_kernel(ne0q_ref, ne1q_ref, ne0t_ref, ne1t_ref, g1_ref, g0_ref):
    def graph_row_tile(q, k_t):
        # (TN, D) @ (D, N) -> (TN, N); bf16 in, f32 accumulate (MXU-native).
        s = jnp.dot(q, k_t, preferred_element_type=jnp.float32)
        s = jnp.maximum(s, 0.0)                       # relu
        m = jnp.max(s, axis=-1, keepdims=True)        # numerically stable softmax
        e = jnp.exp(s - m)
        denom = jnp.sum(e, axis=-1, keepdims=True)
        return e * pl.reciprocal(denom, approx=True)  # divide -> EUP reciprocal

    # Finish one graph before starting the other: halves peak live (TN, N) temps.
    g1_ref[...] = graph_row_tile(ne1q_ref[...], ne0t_ref[...])  # softmax(relu(ne1 @ ne0.T))
    g0_ref[...] = graph_row_tile(ne0q_ref[...], ne1t_ref[...])  # softmax(relu(ne0 @ ne1.T))


def megagraph_pallas(emb0, emb1, memory, *, row_block=128):
    """MegaGraph.forward. emb0/emb1: (N, M), memory: (M, D). Returns [g1, g0]."""
    emb0 = emb0.astype(jnp.float32)
    emb1 = emb1.astype(jnp.float32)
    memory = memory.astype(jnp.float32)
    N, M = emb0.shape
    D = memory.shape[1]

    # ---- Pass 1: hoisted projections + key transposes (single invocation).
    ne0q, ne1q, ne0t, ne1t = pl.pallas_call(
        _project_kernel,
        out_shape=(jax.ShapeDtypeStruct((N, D), jnp.bfloat16),   # ne0 "query" rows
                   jax.ShapeDtypeStruct((N, D), jnp.bfloat16),   # ne1 "query" rows
                   jax.ShapeDtypeStruct((D, N), jnp.bfloat16),   # ne0.T keys
                   jax.ShapeDtypeStruct((D, N), jnp.bfloat16)),  # ne1.T keys
    )(emb0, emb1, memory)

    # ---- Pass 2: row-tiled relu + softmax over lane-dense (TN, N) tiles.
    TN = min(row_block, N)
    grid = (pl.cdiv(N, TN),)

    # VMEM footprint: single-buffered keys, double-buffered queries/outputs,
    # plus the live (TN, N) score/exp temporaries (one graph at a time).
    footprint = (2 * D * N * 2              # keys   (bf16, 1 buffer each)
                 + 2 * 2 * TN * D * 2       # queries (bf16, 2 buffers each)
                 + 2 * 2 * TN * N * 4       # outputs (f32, 2 buffers each)
                 + 3 * TN * N * 4)          # score + exp temporaries
    vmem_limit = int(min(max(2 * footprint, 8 * 1024 * 1024), 64 * 1024 * 1024))

    def build(single_buffer_keys):
        q_spec = pl.BlockSpec((TN, D), lambda i: (i, 0))
        if single_buffer_keys:
            # Grid-invariant keys: a second pipeline buffer is pure VMEM waste.
            k_spec = pl.BlockSpec((D, N), lambda i: (0, 0),
                                  pipeline_mode=pl.Buffered(1))
        else:
            k_spec = pl.BlockSpec((D, N), lambda i: (0, 0))
        out_spec = pl.BlockSpec((TN, N), lambda i: (i, 0))
        return pl.pallas_call(
            _megagraph_kernel,
            out_shape=(jax.ShapeDtypeStruct((N, N), jnp.float32),   # g1
                       jax.ShapeDtypeStruct((N, N), jnp.float32)),  # g0
            grid=grid,
            in_specs=[q_spec, q_spec, k_spec, k_spec],
            out_specs=(out_spec, out_spec),
            compiler_params=pltpu.CompilerParams(
                dimension_semantics=("parallel",),
                vmem_limit_bytes=vmem_limit),
        )

    # TODO(synk): for very large N on v7x, add a column-tiled online softmax
    # (flash-style running max/sum) so VMEM stays bounded independently of N.
    try:
        g1, g0 = build(True)(ne0q, ne1q, ne0t, ne1t)
    except Exception:
        # Fallback if this JAX build rejects Buffered(1) on top-level specs:
        # identical kernel, default double-buffered keys.
        g1, g0 = build(False)(ne0q, ne1q, ne0t, ne1t)
    return [g1, g0]


# ----------------------------------------------------------------------------
# Pure-JAX reference (mirrors the PyTorch module 1:1) for correctness checking.
# ----------------------------------------------------------------------------
def _megagraph_ref(emb0, emb1, memory):
    ne0 = emb0 @ memory
    ne1 = emb1 @ memory
    g0 = jax.nn.softmax(jax.nn.relu(ne0 @ ne1.T), axis=-1)
    g1 = jax.nn.softmax(jax.nn.relu(ne1 @ ne0.T), axis=-1)
    return [g1, g0]


# ----------------------------------------------------------------------------
if __name__ == "__main__":
    # Small shapes consistent with the module: num_nodes=16, mem_num=8, mem_dim=32.
    NUM_NODES, MEM_NUM, MEM_DIM = 16, 8, 32

    key = jax.random.PRNGKey(0)
    k0, k1, km = jax.random.split(key, 3)

    # xavier_normal_ init for the two node-embedding parameters.
    std = np.sqrt(2.0 / (NUM_NODES + MEM_NUM))
    emb0 = (std * jax.random.normal(k0, (NUM_NODES, MEM_NUM))).astype(jnp.float32)
    emb1 = (std * jax.random.normal(k1, (NUM_NODES, MEM_NUM))).astype(jnp.float32)
    memory = jax.random.normal(km, (MEM_NUM, MEM_DIM), dtype=jnp.float32)

    g1, g0 = megagraph_pallas(emb0, emb1, memory)
    g1 = jax.block_until_ready(g1)
    g0 = jax.block_until_ready(g0)

    # Verify against the pure-JAX reference of the PyTorch semantics.
    # Tolerance is loosened because the similarity matmuls run bf16-in / f32-acc
    # and the softmax normalization uses the approximate EUP reciprocal.
    r1, r0 = _megagraph_ref(emb0, emb1, memory)
    np.testing.assert_allclose(np.asarray(g1), np.asarray(r1), rtol=1e-1, atol=1e-2)
    np.testing.assert_allclose(np.asarray(g0), np.asarray(r0), rtol=1e-1, atol=1e-2)

    # Sanity: row-stochastic outputs of the right shape.
    assert g1.shape == (NUM_NODES, NUM_NODES) and g0.shape == (NUM_NODES, NUM_NODES)
    np.testing.assert_allclose(np.asarray(g0).sum(-1), np.ones(NUM_NODES), rtol=0, atol=5e-3)
    np.testing.assert_allclose(np.asarray(g1).sum(-1), np.ones(NUM_NODES), rtol=0, atol=5e-3)

    print("KERNEL_OK")
</pallas_src>

<mosaic_0001>
module attributes {stable_mosaic.version = 11 : i64} {
  func.func @_project_kernel(%arg0: memref<16x8xf32, #tpu.memory_space<vmem>>, %arg1: memref<16x8xf32, #tpu.memory_space<vmem>>, %arg2: memref<8x32xf32, #tpu.memory_space<vmem>>, %arg3: memref<16x32xbf16, #tpu.memory_space<vmem>>, %arg4: memref<16x32xbf16, #tpu.memory_space<vmem>>, %arg5: memref<32x16xbf16, #tpu.memory_space<vmem>>, %arg6: memref<32x16xbf16, #tpu.memory_space<vmem>>) attributes {dimension_semantics = [], scalar_prefetch = 0 : i64, scratch_operands = 0 : i64, tpu.core_type = #tpu.core_type<tc>} {
    %c0 = arith.constant 0 : index
    %c0_0 = arith.constant 0 : index
    %0 = vector.load %arg2[%c0, %c0_0] : memref<8x32xf32, #tpu.memory_space<vmem>>, vector<8x32xf32>
    %c0_1 = arith.constant 0 : index
    %c0_2 = arith.constant 0 : index
    %1 = vector.load %arg0[%c0_1, %c0_2] : memref<16x8xf32, #tpu.memory_space<vmem>>, vector<16x8xf32>
    %cst = arith.constant dense<0.000000e+00> : vector<16x32xf32>
    %2 = tpu.matmul %1, %0, %cst {dimension_numbers = #tpu.dot_dimension_numbers<[1], [0], [0], [1], [0, 0, 1, 1], [], []>} : vector<16x8xf32>, vector<8x32xf32>, vector<16x32xf32> -> vector<16x32xf32>
    %c0_3 = arith.constant 0 : index
    %c0_4 = arith.constant 0 : index
    %3 = vector.load %arg1[%c0_3, %c0_4] : memref<16x8xf32, #tpu.memory_space<vmem>>, vector<16x8xf32>
    %cst_5 = arith.constant dense<0.000000e+00> : vector<16x32xf32>
    %4 = tpu.matmul %3, %0, %cst_5 {dimension_numbers = #tpu.dot_dimension_numbers<[1], [0], [0], [1], [0, 0, 1, 1], [], []>} : vector<16x8xf32>, vector<8x32xf32>, vector<16x32xf32> -> vector<16x32xf32>
    %5 = arith.truncf %2 : vector<16x32xf32> to vector<16x32xbf16>
    %c0_6 = arith.constant 0 : index
    %c0_7 = arith.constant 0 : index
    %6 = vector.load %arg3[%c0_6, %c0_7] : memref<16x32xbf16, #tpu.memory_space<vmem>>, vector<16x32xbf16>
    tpu.vector_store %arg3[%c0_6, %c0_7], %5 {strides = array<i32>} : memref<16x32xbf16, #tpu.memory_space<vmem>>, vector<16x32xbf16>,
    %7 = arith.truncf %4 : vector<16x32xf32> to vector<16x32xbf16>
    %c0_8 = arith.constant 0 : index
    %c0_9 = arith.constant 0 : index
    %8 = vector.load %arg4[%c0_8, %c0_9] : memref<16x32xbf16, #tpu.memory_space<vmem>>, vector<16x32xbf16>
    tpu.vector_store %arg4[%c0_8, %c0_9], %7 {strides = array<i32>} : memref<16x32xbf16, #tpu.memory_space<vmem>>, vector<16x32xbf16>,
    %9 = tpu.transpose %2, [1, 0] : vector<16x32xf32> -> vector<32x16xf32>
    %10 = arith.truncf %9 : vector<32x16xf32> to vector<32x16xbf16>
    %c0_10 = arith.constant 0 : index
    %c0_11 = arith.constant 0 : index
    %11 = vector.load %arg5[%c0_10, %c0_11] : memref<32x16xbf16, #tpu.memory_space<vmem>>, vector<32x16xbf16>
    tpu.vector_store %arg5[%c0_10, %c0_11], %10 {strides = array<i32>} : memref<32x16xbf16, #tpu.memory_space<vmem>>, vector<32x16xbf16>,
    %12 = tpu.transpose %4, [1, 0] : vector<16x32xf32> -> vector<32x16xf32>
    %13 = arith.truncf %12 : vector<32x16xf32> to vector<32x16xbf16>
    %c0_12 = arith.constant 0 : index
    %c0_13 = arith.constant 0 : index
    %14 = vector.load %arg6[%c0_12, %c0_13] : memref<32x16xbf16, #tpu.memory_space<vmem>>, vector<32x16xbf16>
    tpu.vector_store %arg6[%c0_12, %c0_13], %13 {strides = array<i32>} : memref<32x16xbf16, #tpu.memory_space<vmem>>, vector<32x16xbf16>,
    return
  }
}

</mosaic_0001>

<llo_original>
// kernel: tpu_custom_call.1
$region0: #{tpu_custom_call.1}
  #allocation0 [shape = 'u32[]', space=smem, size = 0x4, offset = 0x4, fixed_abs, tag = 'smem constant byte address 0x4 - core index']
  #allocation1 [shape = 'u32[144,128]{1,0:T(1,128)}', space=vmem, size = 0x12000, scoped, tag = 'internal scratch']
  %s0 = inlined_call_operand.vmem [shape: f32[16,8], index: 0, kind: input, shape index: {}]
  %s1 = inlined_call_operand.vmem [shape: f32[16,8], index: 1, kind: input, shape index: {}]
  %s2 = inlined_call_operand.vmem [shape: f32[8,32], index: 2, kind: input, shape index: {}]
  %s3 = inlined_call_operand.hbm [shape: bf16[16,32], index: 3, kind: output, shape index: {0}]
  %s4 = inlined_call_operand.hbm [shape: bf16[16,32], index: 4, kind: output, shape index: {1}]
  %s5 = inlined_call_operand.vmem [shape: bf16[32,16], index: 5, kind: output, shape index: {2}]
  %s6 = inlined_call_operand.vmem [shape: bf16[32,16], index: 6, kind: output, shape index: {3}]
  %7 = xla_tuple %s3, %s4, %s5, %s6
  %s8 = sld [smem:[#allocation0]]
  $region46: #{tpu_custom_call.1} parent=0
    _
  %s10 = ssub.s32 1, %s8
  %s11 = scalar_select 0, %s10, %s8
  $region1: #{tpu_custom_call.1} parent=0
    #allocation2 [shape = 'u8[4096]{0}', space=vmem, size = 0x1000, scoped, tag = 'output window, operand 0, single buffered']
    #allocation3 [shape = 's32[1]{0}', space=sflag, size = 0x4, scoped, tag = 'scoped memory for tpu_custom_call.1']
    #allocation4 [shape = 'u8[4096]{0}', space=vmem, size = 0x1000, scoped, tag = 'output window, operand 1, single buffered']
    #allocation5 [shape = 's32[1]{0}', space=sflag, size = 0x4, scoped, tag = 'scoped memory for tpu_custom_call.1']
    %12 = vsyncpa [#allocation3], 0
    %13 = vsyncpa [#allocation5], 0
    // Predicated region
    $region2: #{tpu_custom_call.1} parent=1 // pred_check
      _
    $region3: #{tpu_custom_call.1} parent=1 // pred_check_branch
      %15 = sbr.rel (0) target = $region5
    $region4: #{tpu_custom_call.1} parent=1 // pred_region
      _
    $region5: #{tpu_custom_call.1} parent=1 // pred_fallthru
      _
    // Predicated region
    $region6: #{tpu_custom_call.1} parent=1 // pred_check
      _
    $region7: #{tpu_custom_call.1} parent=1 // pred_check_branch
      %17 = sbr.rel (0) target = $region9
    $region8: #{tpu_custom_call.1} parent=1 // pred_region
      _
    $region9: #{tpu_custom_call.1} parent=1 // pred_fallthru
      _
    // Predicated region
    $region10: #{tpu_custom_call.1} parent=1 // pred_check
      _
    $region11: #{tpu_custom_call.1} parent=1 // pred_check_branch
      %19 = sbr.rel (0) target = $region13
    $region12: #{tpu_custom_call.1} parent=1 // pred_region
      _
    $region13: #{tpu_custom_call.1} parent=1 // pred_fallthru
      _
    %v20 = vld [vmem:[%s2] sm:$0xff]
    %v21 = vld [vmem:[%s0] sm:$0xff]
    %v22 = vld [vmem:[%s0 + $0x8] sm:$0xff]
    %vm23 = vcmask 64512
    %v25 = vsel %vm23, %v21, 0
    %v28 = vsel %vm23, %v22, 0
    %30 = vmatprep.subr.mxu0 0.0
    %31 = vmatpush1.msra.mxu0 %v20
    %32 = vmatprep.subr.mxu0 0.0
    %33 = vmatpush1.msra.mxu0 0.0
    %34 = vmatprep.subr.mxu0 0.0
    %35 = vmatpush1.msra.mxu0 0.0
    %36 = vmatprep.subr.mxu0 0.0
    %37 = vmatpush1.msra.mxu0 0.0
    %38 = vmatprep.subr.mxu0 0.0
    %39 = vmatpush1.msra.mxu0 0.0
    %40 = vmatprep.subr.mxu0 0.0
    %41 = vmatpush1.msra.mxu0 0.0
    %42 = vmatprep.subr.mxu0 0.0
    %43 = vmatpush1.msra.mxu0 0.0
    %44 = vmatprep.subr.mxu0 0.0
    %45 = vmatpush1.msra.mxu0 0.0
    %46 = vmatprep.subr.mxu0 0.0
    %47 = vmatpush1.msra.mxu0 0.0
    %48 = vmatprep.subr.mxu0 0.0
    %49 = vmatpush1.msra.mxu0 0.0
    %50 = vmatprep.subr.mxu0 0.0
    %51 = vmatpush1.msra.mxu0 0.0
    %52 = vmatprep.subr.mxu0 0.0
    %53 = vmatpush1.msra.mxu0 0.0
    %54 = vmatprep.subr.mxu0 0.0
    %55 = vmatpush1.msra.mxu0 0.0
    %56 = vmatprep.subr.mxu0 0.0
    %57 = vmatpush1.msra.mxu0 0.0
    %58 = vmatprep.subr.mxu0 0.0
    %59 = vmatpush1.msra.mxu0 0.0
    %60 = vmatprep.subr.mxu0 0.0
    %61 = vmatpush1.msra.mxu0 0.0
    %62 = vmatprep.subr.mxu0 0.0
    %63 = vmatpush1.msra.mxu0 0.0
    %64 = vmatprep.subr.mxu0 0.0
    %65 = vmatpush1.msra.mxu0 0.0
    %66 = vmatprep.subr.mxu0 0.0
    %67 = vmatpush1.msra.mxu0 0.0
    %68 = vmatprep.subr.mxu0 0.0
    %69 = vmatpush1.msra.mxu0 0.0
    %70 = vmatprep.subr.mxu0 0.0
    %71 = vmatpush1.msra.mxu0 0.0
    %72 = vmatprep.subr.mxu0 0.0
    %73 = vmatpush1.msra.mxu0 0.0
    %74 = vmatprep.subr.mxu0 0.0
    %75 = vmatpush1.msra.mxu0 0.0
    %76 = vmatprep.subr.mxu0 0.0
    %77 = vmatpush1.msra.mxu0 0.0
    %78 = vmatprep.subr.mxu0 0.0
    %79 = vmatpush1.msra.mxu0 0.0
    %80 = vmatprep.subr.mxu0 0.0
    %81 = vmatpush1.msra.mxu0 0.0
    %82 = vmatprep.subr.mxu0 0.0
    %83 = vmatpush1.msra.mxu0 0.0
    %84 = vmatprep.subr.mxu0 0.0
    %85 = vmatpush1.msra.mxu0 0.0
    %86 = vmatprep.subr.mxu0 0.0
    %87 = vmatpush1.msra.mxu0 0.0
    %88 = vmatprep.subr.mxu0 0.0
    %89 = vmatpush1.msra.mxu0 0.0
    %90 = vmatprep.subr.mxu0 0.0
    %91 = vmatpush1.msra.mxu0 0.0
    %92 = vmatprep.subr.mxu0 0.0
    %93 = vmatpush1.msra.mxu0 0.0
    %94 = vmatprep.mubr.f32.mxu0 0.0
    %95 = vmatmul.mubr.f32.gmra.mrb[0].mxu0 %v25
    %v96 = vpop.f32.mrb[0].mxu0
    %v97 = vadd.f32 0.0, %v96
    %v98 = vpop.f32.mrb[0].mxu0
    %99 = vmatprep.mubr.f32.mxu0 0.0
    %100 = vmatmul.mubr.f32.gmra.mrb[0].mxu0 %v28
    %v101 = vpop.f32.mrb[0].mxu0
    %v102 = vadd.f32 0.0, %v101
    %v103 = vpop.f32.mrb[0].mxu0
    %104 = vdwg.mxu0
    %v105 = vld [vmem:[%s1] sm:$0xff]
    %v106 = vld [vmem:[%s1 + $0x8] sm:$0xff]
    %v108 = vsel %vm23, %v105, 0
    %v111 = vsel %vm23, %v106, 0
    %113 = vmatprep.subr.mxu0 0.0
    %114 = vmatpush1.msra.mxu0 %v20
    %115 = vmatprep.subr.mxu0 0.0
    %116 = vmatpush1.msra.mxu0 0.0
    %117 = vmatprep.subr.mxu0 0.0
    %118 = vmatpush1.msra.mxu0 0.0
    %119 = vmatprep.subr.mxu0 0.0
    %120 = vmatpush1.msra.mxu0 0.0
    %121 = vmatprep.subr.mxu0 0.0
    %122 = vmatpush1.msra.mxu0 0.0
    %123 = vmatprep.subr.mxu0 0.0
    %124 = vmatpush1.msra.mxu0 0.0
    %125 = vmatprep.subr.mxu0 0.0
    %126 = vmatpush1.msra.mxu0 0.0
    %127 = vmatprep.subr.mxu0 0.0
    %128 = vmatpush1.msra.mxu0 0.0
    %129 = vmatprep.subr.mxu0 0.0
    %130 = vmatpush1.msra.mxu0 0.0
    %131 = vmatprep.subr.mxu0 0.0
    %132 = vmatpush1.msra.mxu0 0.0
    %133 = vmatprep.subr.mxu0 0.0
    %134 = vmatpush1.msra.mxu0 0.0
    %135 = vmatprep.subr.mxu0 0.0
    %136 = vmatpush1.msra.mxu0 0.0
    %137 = vmatprep.subr.mxu0 0.0
    %138 = vmatpush1.msra.mxu0 0.0
    %139 = vmatprep.subr.mxu0 0.0
    %140 = vmatpush1.msra.mxu0 0.0
    %141 = vmatprep.subr.mxu0 0.0
    %142 = vmatpush1.msra.mxu0 0.0
    %143 = vmatprep.subr.mxu0 0.0
    %144 = vmatpush1.msra.mxu0 0.0
    %145 = vmatprep.subr.mxu0 0.0
    %146 = vmatpush1.msra.mxu0 0.0
    %147 = vmatprep.subr.mxu0 0.0
    %148 = vmatpush1.msra.mxu0 0.0
    %149 = vmatprep.subr.mxu0 0.0
    %150 = vmatpush1.msra.mxu0 0.0
    %151 = vmatprep.subr.mxu0 0.0
    %152 = vmatpush1.msra.mxu0 0.0
    %153 = vmatprep.subr.mxu0 0.0
    %154 = vmatpush1.msra.mxu0 0.0
    %155 = vmatprep.subr.mxu0 0.0
    %156 = vmatpush1.msra.mxu0 0.0
    %157 = vmatprep.subr.mxu0 0.0
    %158 = vmatpush1.msra.mxu0 0.0
    %159 = vmatprep.subr.mxu0 0.0
    %160 = vmatpush1.msra.mxu0 0.0
    %161 = vmatprep.subr.mxu0 0.0
    %162 = vmatpush1.msra.mxu0 0.0
    %163 = vmatprep.subr.mxu0 0.0
    %164 = vmatpush1.msra.mxu0 0.0
    %165 = vmatprep.subr.mxu0 0.0
    %166 = vmatpush1.msra.mxu0 0.0
    %167 = vmatprep.subr.mxu0 0.0
    %168 = vmatpush1.msra.mxu0 0.0
    %169 = vmatprep.subr.mxu0 0.0
    %170 = vmatpush1.msra.mxu0 0.0
    %171 = vmatprep.subr.mxu0 0.0
    %172 = vmatpush1.msra.mxu0 0.0
    %173 = vmatprep.subr.mxu0 0.0
    %174 = vmatpush1.msra.mxu0 0.0
    %175 = vmatprep.subr.mxu0 0.0
    %176 = vmatpush1.msra.mxu0 0.0
    %177 = vmatprep.mubr.f32.mxu0 0.0
    %178 = vmatmul.mubr.f32.gmra.mrb[0].mxu0 %v108
    %v179 = vpop.f32.mrb[0].mxu0
    %v180 = vadd.f32 0.0, %v179
    %v181 = vpop.f32.mrb[0].mxu0
    %182 = vmatprep.mubr.f32.mxu0 0.0
    %183 = vmatmul.mubr.f32.gmra.mrb[0].mxu0 %v111
    %v184 = vpop.f32.mrb[0].mxu0
    %v185 = vadd.f32 0.0, %v184
    %v186 = vpop.f32.mrb[0].mxu0
    %187 = vdwg.mxu0
    %v188 = vpack.c.bf16 %v102, %v97
    %v190 = vunpack.c.l.b16 %v188
    %v191 = vunpack.c.h.b16 %v188
    %v192 = vpack.c.b16 %v190, %v190
    %v193 = vpack.c.b16 %v191, %v191
    %vm196 = vcmask 257024
    %197 = vst.msk [vmem:[#allocation2] sm:$0xf] %vm196, %v192
    %198 = vst.msk [vmem:[#allocation2 + $0x4] sm:$0xf] %vm196, %v193
    %v199 = vpack.c.bf16 %v185, %v180
    %v201 = vunpack.c.l.b16 %v199
    %v202 = vunpack.c.h.b16 %v199
    %v203 = vpack.c.b16 %v201, %v201
    %v204 = vpack.c.b16 %v202, %v202
    %207 = vst.msk [vmem:[#allocation4] sm:$0xf] %vm196, %v203
    %208 = vst.msk [vmem:[#allocation4 + $0x4] sm:$0xf] %vm196, %v204
    %209 = vxpose.xlu0.b32.start [1/16] %v97, 128
    %210 = vxpose.xlu0.b32.cont [2/16] %v102, 128
    %211 = vxpose.xlu0.b32.cont [3/16] 0.0, 128
    %212 = vxpose.xlu0.b32.cont [4/16] 0.0, 128
    %213 = vxpose.xlu0.b32.cont [5/16] 0.0, 128
    %214 = vxpose.xlu0.b32.cont [6/16] 0.0, 128
    %215 = vxpose.xlu0.b32.cont [7/16] 0.0, 128
    %216 = vxpose.xlu0.b32.cont [8/16] 0.0, 128
    %217 = vxpose.xlu0.b32.cont [9/16] 0.0, 128
    %218 = vxpose.xlu0.b32.cont [10/16] 0.0, 128
    %219 = vxpose.xlu0.b32.cont [11/16] 0.0, 128
    %220 = vxpose.xlu0.b32.cont [12/16] 0.0, 128
    %221 = vxpose.xlu0.b32.cont [13/16] 0.0, 128
    %222 = vxpose.xlu0.b32.cont [14/16] 0.0, 128
    %223 = vxpose.xlu0.b32.cont [15/16] 0.0, 128
    %224 = vxpose.xlu0.b32.end [16/16] 0.0, 128
    %v225 = vpop.trf.xlu0
    %v226 = vpop.trf.xlu0
    %v227 = vpop.trf.xlu0
    %v228 = vpop.trf.xlu0
    %v229 = vpop.trf.xlu0
    %v230 = vpop.trf.xlu0
    %v231 = vpop.trf.xlu0
    %v232 = vpop.trf.xlu0
    %v233 = vpop.trf.xlu0
    %v234 = vpop.trf.xlu0
    %v235 = vpop.trf.xlu0
    %v236 = vpop.trf.xlu0
    %v237 = vpop.trf.xlu0
    %v238 = vpop.trf.xlu0
    %v239 = vpop.trf.xlu0
    %v240 = vpop.trf.xlu0
    %v241 = vpack.c.bf16 %v226, %v225
    %v242 = vpack.c.bf16 %v228, %v227
    %v245 = vunpack.c.l.b16 %v241
    %v246 = vunpack.c.h.b16 %v241
    %v247 = vunpack.c.l.b16 %v242
    %v248 = vunpack.c.h.b16 %v242
    %v249 = vpack.c.b16 %v245, %v245
    %v250 = vpack.c.b16 %v246, %v246
    %v251 = vpack.c.b16 %v247, %v247
    %v252 = vpack.c.b16 %v248, %v248
    %vm257 = vcmask 125952
    %258 = vst.msk [vmem:[%s5] sm:$0xf] %vm257, %v249
    %259 = vst.msk [vmem:[%s5 + $0x4] sm:$0xf] %vm257, %v250
    %260 = vst.msk [vmem:[%s5 + $0x8] sm:$0xf] %vm257, %v251
    %261 = vst.msk [vmem:[%s5 + $0xc] sm:$0xf] %vm257, %v252
    %262 = vxpose.xlu0.b32.start [1/16] %v180, 128
    %263 = vxpose.xlu0.b32.cont [2/16] %v185, 128
    %264 = vxpose.xlu0.b32.cont [3/16] 0.0, 128
    %265 = vxpose.xlu0.b32.cont [4/16] 0.0, 128
    %266 = vxpose.xlu0.b32.cont [5/16] 0.0, 128
    %267 = vxpose.xlu0.b32.cont [6/16] 0.0, 128
    %268 = vxpose.xlu0.b32.cont [7/16] 0.0, 128
    %269 = vxpose.xlu0.b32.cont [8/16] 0.0, 128
    %270 = vxpose.xlu0.b32.cont [9/16] 0.0, 128
    %271 = vxpose.xlu0.b32.cont [10/16] 0.0, 128
    %272 = vxpose.xlu0.b32.cont [11/16] 0.0, 128
    %273 = vxpose.xlu0.b32.cont [12/16] 0.0, 128
    %274 = vxpose.xlu0.b32.cont [13/16] 0.0, 128
    %275 = vxpose.xlu0.b32.cont [14/16] 0.0, 128
    %276 = vxpose.xlu0.b32.cont [15/16] 0.0, 128
    %277 = vxpose.xlu0.b32.end [16/16] 0.0, 128
    %v278 = vpop.trf.xlu0
    %v279 = vpop.trf.xlu0
    %v280 = vpop.trf.xlu0
    %v281 = vpop.trf.xlu0
    %v282 = vpop.trf.xlu0
    %v283 = vpop.trf.xlu0
    %v284 = vpop.trf.xlu0
    %v285 = vpop.trf.xlu0
    %v286 = vpop.trf.xlu0
    %v287 = vpop.trf.xlu0
    %v288 = vpop.trf.xlu0
    %v289 = vpop.trf.xlu0
    %v290 = vpop.trf.xlu0
    %v291 = vpop.trf.xlu0
    %v292 = vpop.trf.xlu0
    %v293 = vpop.trf.xlu0
    %v294 = vpack.c.bf16 %v279, %v278
    %v295 = vpack.c.bf16 %v281, %v280
    %v298 = vunpack.c.l.b16 %v294
    %v299 = vunpack.c.h.b16 %v294
    %v300 = vunpack.c.l.b16 %v295
    %v301 = vunpack.c.h.b16 %v295
    %v302 = vpack.c.b16 %v298, %v298
    %v303 = vpack.c.b16 %v299, %v299
    %v304 = vpack.c.b16 %v300, %v300
    %v305 = vpack.c.b16 %v301, %v301
    %310 = vst.msk [vmem:[%s6] sm:$0xf] %vm257, %v302
    %311 = vst.msk [vmem:[%s6 + $0x4] sm:$0xf] %vm257, %v303
    %312 = vst.msk [vmem:[%s6 + $0x8] sm:$0xf] %vm257, %v304
    %313 = vst.msk [vmem:[%s6 + $0xc] sm:$0xf] %vm257, %v305
    // Predicated region
    $region14: #{tpu_custom_call.1} parent=1 // pred_check
      _
    $region15: #{tpu_custom_call.1} parent=1 // pred_check_branch
      %315 = sbr.rel (0) target = $region17
    $region16: #{tpu_custom_call.1} parent=1 // pred_region
      %s317 = ssub.s32 128, 128
      %318 = vsyncadd [#allocation3], %s317
      %s319 = sshll.u32 [#allocation2], 4
      %s320 = int_to_ptr.vmem [resolvable:$true] %s319
      %325 = dma.vmem_to_hbm [thread:$0]  %s320, 128, %s3, [#allocation3], 64, 64, 4
    $region17: #{tpu_custom_call.1} parent=1 // pred_fallthru
      _
    // Predicated region
    $region18: #{tpu_custom_call.1} parent=1 // pred_check
      _
    $region19: #{tpu_custom_call.1} parent=1 // pred_check_branch
      %327 = sbr.rel (0) target = $region21
    $region20: #{tpu_custom_call.1} parent=1 // pred_region
      %s329 = ssub.s32 128, 128
      %330 = vsyncadd [#allocation5], %s329
      %s331 = sshll.u32 [#allocation4], 4
      %s332 = int_to_ptr.vmem [resolvable:$true] %s331
      %337 = dma.vmem_to_hbm [thread:$0]  %s332, 128, %s4, [#allocation5], 64, 64, 4
    $region21: #{tpu_custom_call.1} parent=1 // pred_fallthru
      _
    // Predicated region
    $region22: #{tpu_custom_call.1} parent=1 // pred_check
      _
    $region23: #{tpu_custom_call.1} parent=1 // pred_check_branch
      %339 = sbr.rel (0) target = $region25
    $region24: #{tpu_custom_call.1} parent=1 // pred_region
      _
    $region25: #{tpu_custom_call.1} parent=1 // pred_fallthru
      _
    // Predicated region
    $region26: #{tpu_custom_call.1} parent=1 // pred_check
      _
    $region27: #{tpu_custom_call.1} parent=1 // pred_check_branch
      %341 = sbr.rel (0) target = $region29
    $region28: #{tpu_custom_call.1} parent=1 // pred_region
      _
    $region29: #{tpu_custom_call.1} parent=1 // pred_fallthru
      _
    // Predicated region
    $region30: #{tpu_custom_call.1} parent=1 // pred_check
      _
    $region31: #{tpu_custom_call.1} parent=1 // pred_check_branch
      %343 = sbr.rel (0) target = $region33
    $region32: #{tpu_custom_call.1} parent=1 // pred_region
      %344 = dma.done [#allocation3], 128
    $region33: #{tpu_custom_call.1} parent=1 // pred_fallthru
      _
    // Predicated region
    $region34: #{tpu_custom_call.1} parent=1 // pred_check
      _
    $region35: #{tpu_custom_call.1} parent=1 // pred_check_branch
      %346 = sbr.rel (0) target = $region37
    $region36: #{tpu_custom_call.1} parent=1 // pred_region
      %347 = dma.done [#allocation5], 128
    $region37: #{tpu_custom_call.1} parent=1 // pred_fallthru
      _
    // Predicated region
    $region38: #{tpu_custom_call.1} parent=1 // pred_check
      _
    $region39: #{tpu_custom_call.1} parent=1 // pred_check_branch
      %349 = sbr.rel (0) target = $region41
    $region40: #{tpu_custom_call.1} parent=1 // pred_region
      _
    $region41: #{tpu_custom_call.1} parent=1 // pred_fallthru
      _
    // Predicated region
    $region42: #{tpu_custom_call.1} parent=1 // pred_check
      _
    $region43: #{tpu_custom_call.1} parent=1 // pred_check_branch
      %351 = sbr.rel (0) target = $region45
    $region44: #{tpu_custom_call.1} parent=1 // pred_region
      _
    $region45: #{tpu_custom_call.1} parent=1 // pred_fallthru
      _
    %352 = vsyncpa [#allocation3], 1
    %353 = vsyncpa [#allocation5], 1

</llo_original>
